<compile_context>
chip_gen: v6e
topology: v6e:2x2x1
jax: 0.10.0
libtpu: 0.0.40
codegen_flags: <defaults>
</compile_context>

<pallas_src>
import functools

import jax
import jax.numpy as jnp
from jax import lax
from jax.experimental import pallas as pl
from jax.experimental.pallas import tpu as pltpu


def _round_up(x: int, m: int) -> int:
    return (x + m - 1) // m * m


def _label_classifier_kernel(emb_ref, w_ref, att_ref, out_ref, *, num_labels):
    # emb_ref: [TR, D], w_ref: [D, L_pad], att_ref: [TR, 1] int32 (0/1), out_ref: [TR, L_pad]
    logits = jnp.dot(emb_ref[...], w_ref[...], preferred_element_type=jnp.float32)
    mask = att_ref[...] > 0                                   # [TR, 1] -> broadcasts over L_pad
    l_pad = out_ref.shape[-1]
    if num_labels != l_pad:
        # Padded label columns -> -inf so the padded output is safe for softmax/argmax
        # downstream without any post-kernel slice.
        col_ok = lax.broadcasted_iota(jnp.int32, (1, l_pad), 1) < num_labels
        mask = jnp.logical_and(mask, col_ok)                  # [TR, L_pad]
    out_ref[...] = jnp.where(mask, logits, -jnp.inf).astype(out_ref.dtype)


@functools.partial(
    jax.jit, static_argnames=("compute_dtype", "out_dtype", "return_padded_labels"))
def label_classifier_forward(emb_sentences, att_sentences, weight, *,
                             compute_dtype=None, out_dtype=jnp.float32,
                             return_padded_labels=False):
    """emb_sentences: [B, S, D] float32
       att_sentences: [B, S] bool
       weight:        [L, D] float32   (nn.Linear weight, no bias)
       compute_dtype: optional dtype for the streamed matmul operands (e.g. bf16);
                      accumulation stays float32.
       out_dtype:     logits dtype (bf16 halves the output write if downstream tolerates).
       return_padded_labels: if True, return [B, S, round_up(L,128)] with padded label
                      columns at -inf (skips the post-kernel column copy).
       returns logits [B, S, L] (-inf where att is False)."""
    B, S, D = emb_sentences.shape
    L = weight.shape[0]
    R = B * S
    L_pad = _round_up(L, 128)                                 # lane-dense output stores

    emb_flat = emb_sentences.reshape(R, D)
    att_flat = att_sentences.reshape(R, 1).astype(jnp.int32)
    w_t = jnp.transpose(weight)                               # [D, L]
    if L_pad != L:
        w_t = jnp.pad(w_t, ((0, 0), (0, L_pad - L)))          # tiny, one-off

    if compute_dtype is not None:
        # NOTE: prefer producing emb in compute_dtype upstream; this cast is itself a
        # full extra HBM pass over the emb stream.
        emb_flat = emb_flat.astype(compute_dtype)
        w_t = w_t.astype(compute_dtype)

    eb = jnp.dtype(emb_flat.dtype).itemsize
    ob = jnp.dtype(out_dtype).itemsize

    # --- row tiling: no row padding; Pallas masks the ragged final block ------------
    VMEM_BUDGET = 40 << 20                        # working-set budget (v7x-safe)
    TR_CAP = 2048 if eb >= 4 else 4096
    per_row = 2 * D * eb + 2 * L_pad * ob + 2 * 4             # dbl-buffered emb + out + att
    fixed = 2 * D * L_pad * eb                                # resident weight
    tr_fit = max(8, ((VMEM_BUDGET - fixed) // max(per_row, 1)) // 8 * 8)
    half_r = _round_up(max((R + 1) // 2, 1), 8)               # >= 2 tiles so both v7x TCs work
    TR = max(8, min(TR_CAP, tr_fit, half_r))
    n_tiles = pl.cdiv(R, TR)

    cost = pl.CostEstimate(
        flops=2 * R * D * L_pad,
        transcendentals=0,
        bytes_accessed=(R * D * eb                 # emb stream (dominant)
                        + D * L_pad * eb           # weight (resident)
                        + R * 4                    # att mask
                        + R * L_pad * ob),         # output
    )

    out = pl.pallas_call(
        functools.partial(_label_classifier_kernel, num_labels=L),
        out_shape=jax.ShapeDtypeStruct((R, L_pad), out_dtype),
        grid=(n_tiles,),
        in_specs=[
            pl.BlockSpec((TR, D), lambda i: (i, 0)),          # emb tile (double-buffered)
            pl.BlockSpec((D, L_pad), lambda i: (0, 0)),       # weight, resident
            pl.BlockSpec((TR, 1), lambda i: (i, 0)),          # att mask tile
        ],
        out_specs=pl.BlockSpec((TR, L_pad), lambda i: (i, 0)),
        compiler_params=pltpu.CompilerParams(
            dimension_semantics=("parallel",),                # shard row tiles on v7x's 2 TCs
            vmem_limit_bytes=48 * 1024 * 1024),               # explicit (v5e default is 16 MiB)
        cost_estimate=cost,
    )(emb_flat, w_t, att_flat)

    out = out.reshape(B, S, L_pad)
    if return_padded_labels or L_pad == L:
        return out
    return out[..., :L]


if __name__ == "__main__":
    key = jax.random.PRNGKey(0)
    k_emb, k_w, k_emb2 = jax.random.split(key, 3)

    # Small shapes consistent with the module: batch=2, seq=8, hidden=32, labels=16
    B, S, D, L = 2, 8, 32, 16
    emb_sentences = jax.random.normal(k_emb, (B, S, D), dtype=jnp.float32)
    lengths = jnp.array([6, 4], dtype=jnp.int32)
    att_sentences = jnp.arange(S)[None, :] < lengths[:, None]            # [B, S] bool
    weight = jax.random.normal(k_w, (L, D), dtype=jnp.float32) * 0.02    # nn.Linear weight [L, D]

    ref = jnp.where(att_sentences[..., None],
                    jnp.einsum('bsd,ld->bsl', emb_sentences, weight),
                    -jnp.inf)
    finite = jnp.isfinite(ref)

    # 1) Exact f32 path (default: matches the PyTorch module semantics).
    logits = label_classifier_forward(emb_sentences, att_sentences, weight)
    jax.block_until_ready(logits)
    assert logits.shape == (B, S, L)
    assert bool(jnp.array_equal(finite, jnp.isfinite(logits)))
    assert bool(jnp.allclose(jnp.where(finite, logits, 0.0),
                             jnp.where(finite, ref, 0.0), atol=1e-5))

    # 2) bf16-streamed emb path (halves HBM traffic; f32 accumulation). Dtype-aware tol.
    logits_bf16 = label_classifier_forward(emb_sentences, att_sentences, weight,
                                           compute_dtype=jnp.bfloat16)
    jax.block_until_ready(logits_bf16)
    assert bool(jnp.array_equal(finite, jnp.isfinite(logits_bf16)))
    assert bool(jnp.allclose(jnp.where(finite, logits_bf16, 0.0),
                             jnp.where(finite, ref, 0.0), rtol=2e-2, atol=2e-2))

    # 3) Padded-label output (no post-kernel column copy; padded cols are -inf).
    logits_pad = label_classifier_forward(emb_sentences, att_sentences, weight,
                                          return_padded_labels=True)
    jax.block_until_ready(logits_pad)
    assert logits_pad.shape == (B, S, 128)
    assert bool(jnp.all(logits_pad[..., L:] == -jnp.inf))
    assert bool(jnp.allclose(jnp.where(finite, logits_pad[..., :L], 0.0),
                             jnp.where(finite, ref, 0.0), atol=1e-5))

    # 4) Ragged row count (R not divisible by TR): exercises the no-row-padding path.
    S2 = 11
    emb2 = jax.random.normal(k_emb2, (B, S2, D), dtype=jnp.float32)
    att2 = jnp.arange(S2)[None, :] < jnp.array([7, 5], dtype=jnp.int32)[:, None]
    ref2 = jnp.where(att2[..., None], jnp.einsum('bsd,ld->bsl', emb2, weight), -jnp.inf)
    fin2 = jnp.isfinite(ref2)
    logits2 = label_classifier_forward(emb2, att2, weight)
    jax.block_until_ready(logits2)
    assert logits2.shape == (B, S2, L)
    assert bool(jnp.array_equal(fin2, jnp.isfinite(logits2)))
    assert bool(jnp.allclose(jnp.where(fin2, logits2, 0.0),
                             jnp.where(fin2, ref2, 0.0), atol=1e-5))

    # TODO(synk): get_labels (softmax/argmax post-processing) is not part of forward()
    # and is left to plain JAX downstream (it can consume the padded logits directly).

    print("KERNEL_OK")
</pallas_src>

<mosaic_0001>
module attributes {stable_mosaic.version = 11 : i64} {
  func.func @_label_classifier_kernel(%arg0: i32, %arg1: memref<8x32xf32, #tpu.memory_space<vmem>>, %arg2: memref<32x128xf32, #tpu.memory_space<vmem>>, %arg3: memref<8x1xi32, #tpu.memory_space<vmem>>, %arg4: memref<8x128xf32, #tpu.memory_space<vmem>>) attributes {dimension_semantics = [#tpu.dimension_semantics<parallel>], iteration_bounds = array<i64: 2>, scalar_prefetch = 0 : i64, scratch_operands = 0 : i64, tpu.core_type = #tpu.core_type<tc>, window_params = [{transform_indices = @transform_0, window_bounds = array<i64: 8, 32>}, {pipeline_mode = #tpu.pipeline_mode<synchronous>, transform_indices = @transform_1, window_bounds = array<i64: 32, 128>}, {transform_indices = @transform_2, window_bounds = array<i64: 8, 1>}, {transform_indices = @transform_3, window_bounds = array<i64: 8, 128>}]} {
    %c0 = arith.constant 0 : index
    %c0_0 = arith.constant 0 : index
    %0 = vector.load %arg1[%c0, %c0_0] : memref<8x32xf32, #tpu.memory_space<vmem>>, vector<8x32xf32>
    %c0_1 = arith.constant 0 : index
    %c0_2 = arith.constant 0 : index
    %1 = vector.load %arg2[%c0_1, %c0_2] : memref<32x128xf32, #tpu.memory_space<vmem>>, vector<32x128xf32>
    %cst = arith.constant dense<0.000000e+00> : vector<8x128xf32>
    %2 = tpu.matmul %0, %1, %cst {dimension_numbers = #tpu.dot_dimension_numbers<[1], [0], [0], [1], [0, 0, 1, 1], [], []>} : vector<8x32xf32>, vector<32x128xf32>, vector<8x128xf32> -> vector<8x128xf32>
    %c0_3 = arith.constant 0 : index
    %c0_4 = arith.constant 0 : index
    %3 = vector.load %arg3[%c0_3, %c0_4] : memref<8x1xi32, #tpu.memory_space<vmem>>, vector<8x1xi32>
    %c0_i32 = arith.constant 0 : i32
    %4 = vector.broadcast %c0_i32 : i32 to vector<8x1xi32>
    %5 = arith.cmpi sgt, %3, %4 : vector<8x1xi32>
    %6 = tpu.iota {dimensions = array<i32: 1>} : vector<1x128xi32>
    %c16_i32 = arith.constant 16 : i32
    %7 = vector.broadcast %c16_i32 : i32 to vector<1x128xi32>
    %8 = arith.cmpi slt, %6, %7 : vector<1x128xi32>
    %9 = vector.broadcast %5 : vector<8x1xi1> to vector<8x128xi1>
    %10 = vector.broadcast %8 : vector<1x128xi1> to vector<8x128xi1>
    %11 = arith.andi %9, %10 : vector<8x128xi1>
    %cst_5 = arith.constant 0xFF800000 : f32
    %12 = vector.broadcast %cst_5 : f32 to vector<8x128xf32>
    %13 = arith.select %11, %2, %12 : vector<8x128xi1>, vector<8x128xf32>
    %c0_6 = arith.constant 0 : index
    %c0_7 = arith.constant 0 : index
    %14 = vector.load %arg4[%c0_6, %c0_7] : memref<8x128xf32, #tpu.memory_space<vmem>>, vector<8x128xf32>
    tpu.vector_store %arg4[%c0_6, %c0_7], %13 {strides = array<i32>} : memref<8x128xf32, #tpu.memory_space<vmem>>, vector<8x128xf32>,
    return
  }
  func.func @transform_0(%arg0: i32) -> (i32, i32) {
    %c0_i32 = arith.constant 0 : i32
    %c0_i32_0 = arith.constant 0 : i32
    return %arg0, %c0_i32 : i32, i32
  }
  func.func @transform_1(%arg0: i32) -> (i32, i32) {
    %c0_i32 = arith.constant 0 : i32
    %c0_i32_0 = arith.constant 0 : i32
    %c0_i32_1 = arith.constant 0 : i32
    return %c0_i32, %c0_i32_0 : i32, i32
  }
  func.func @transform_2(%arg0: i32) -> (i32, i32) {
    %c0_i32 = arith.constant 0 : i32
    %c0_i32_0 = arith.constant 0 : i32
    return %arg0, %c0_i32 : i32, i32
  }
  func.func @transform_3(%arg0: i32) -> (i32, i32) {
    %c0_i32 = arith.constant 0 : i32
    %c0_i32_0 = arith.constant 0 : i32
    return %arg0, %c0_i32 : i32, i32
  }
}

</mosaic_0001>

<llo_original>
// kernel: label_classifier_forward.1
$region0: #{label_classifier_forward.1}
  #allocation0 [shape = 'u32[]', space=smem, size = 0x4, offset = 0x4, fixed_abs, tag = 'smem constant byte address 0x4 - core index']
  #allocation1 [shape = 'u32[144,128]{1,0:T(1,128)}', space=vmem, size = 0x12000, scoped, tag = 'internal scratch']
  %s0 = inlined_call_operand.vmem [shape: f32[16,32], index: 0, kind: input, shape index: {}]
  %s1 = inlined_call_operand.vmem [shape: f32[32,128], index: 1, kind: input, shape index: {}]
  %s2 = inlined_call_operand.vmem [shape: s32[16,1], index: 2, kind: input, shape index: {}]
  %s3 = inlined_call_operand.hbm [shape: f32[16,128], index: 3, kind: output, shape index: {}]
  %s4 = sld [smem:[#allocation0]]
  $region45: #{label_classifier_forward.1} parent=0
    _
  %s6 = ssub.s32 1, %s4
  %s7 = scalar_select 0, %s6, %s4
  $region1: #{label_classifier_forward.1} parent=0
    #allocation2 [shape = 'u8[8192]{0}', space=vmem, size = 0x2000, scoped, tag = 'output window, operand 0']
    #allocation3 [shape = 's32[2]{0}', space=sflag, size = 0x8, scoped, tag = 'scoped memory for label_classifier_forward.1']
    %8 = vsyncpa [#allocation3], 0
    %s9 = scalar_lea.sflag [#allocation3], 1
    %10 = vsyncpa %s9, 0
    loop: start=0, step=1, limit=4
    $region2: #{label_classifier_forward.1} parent=1 // loop_pre_header
      _
    $region3: #{label_classifier_forward.1} parent=1 // loop_header
      %s12 = sphi 0, %s16
      %p13 = scmp.ge.s32.totalorder %s12, 4
      %s22 = sphi 0, %s24
      %s25 = sphi 0, %s22
      %s26 = sphi 0, %s25
      %s42 = sphi 0, %s26
      %s46 = sphi 0, %s46
      %s48 = sphi 0, %s46
      %s49 = sphi 0, %s48
      %s63 = sphi 0, %s49
      %s69 = sphi 0, %s71
      %s72 = sphi 0, %s69
      %s73 = sphi 0, %s72
      %s89 = sphi 0, %s73
      %s95 = sphi 0, %s97
      %s98 = sphi 0, %s95
      %s99 = sphi 0, %s98
      %s115 = sphi 0, %s99
    $region4: #{label_classifier_forward.1} parent=1 // loop_header_branch
      %15 = sbr.rel (%p13) target = $region8
    $region5: #{label_classifier_forward.1} parent=1 // loop_body
      %s17 = ssub.s32 %s12, 1
      %s18 = ssub.s32 %s12, 2
      %s19 = sadd.s32 %s12, 1
      %s20 = ssub.s32 %s12, %s19
      %p21 = scmp.eq.s32.totalorder %s20, 0
      %s23 = sadd.s32 %s22, 1
      %s24 = scalar_select %p21, %s22, %s23
      %p27 = pneg %p21
      %p28 = scmp.eq.s32.totalorder %s12, 1
      %p29 = por %p27, %p28
      %p30 = scmp.ne.s32.totalorder %s22, %s25
      %p31 = scmp.eq.s32.totalorder %s12, 0
      %p32 = por %p30, %p31
      %p33 = scmp.ne.s32.totalorder %s22, %s25
      %p34 = scmp.eq.s32.totalorder %s17, 1
      %p35 = por %p33, %p34
      %p36 = scmp.ne.s32.totalorder %s25, %s26
      %p37 = scmp.eq.s32.totalorder %s17, 0
      %p38 = por %p36, %p37
      %p39 = scmp.ne.s32.totalorder %s25, %s26
      %p40 = scmp.eq.s32.totalorder %s18, 1
      %p41 = por %p39, %p40
      %p43 = scmp.ne.s32.totalorder %s26, %s42
      %p44 = scmp.eq.s32.totalorder %s18, 0
      %p45 = por %p43, %p44
      %s47 = sadd.s32 %s46, 1
      %p50 = scmp.eq.s32.totalorder %s12, 1
      %p51 = scmp.ne.s32.totalorder %s46, %s48
      %p52 = scmp.eq.s32.totalorder %s12, 0
      %p53 = por %p51, %p52
      %p54 = scmp.ne.s32.totalorder %s46, %s48
      %p55 = scmp.eq.s32.totalorder %s17, 1
      %p56 = por %p54, %p55
      %p57 = scmp.ne.s32.totalorder %s48, %s49
      %p58 = scmp.eq.s32.totalorder %s17, 0
      %p59 = por %p57, %p58
      %p60 = scmp.ne.s32.totalorder %s48, %s49
      %p61 = scmp.eq.s32.totalorder %s18, 1
      %p62 = por %p60, %p61
      %p64 = scmp.ne.s32.totalorder %s49, %s63
      %p65 = scmp.eq.s32.totalorder %s18, 0
      %p66 = por %p64, %p65
      %s67 = ssub.s32 %s12, %s19
      %p68 = scmp.eq.s32.totalorder %s67, 0
      %s70 = sadd.s32 %s69, 1
      %s71 = scalar_select %p68, %s69, %s70
      %p74 = pneg %p68
      %p75 = scmp.eq.s32.totalorder %s12, 1
      %p76 = por %p74, %p75
      %p77 = scmp.ne.s32.totalorder %s69, %s72
      %p78 = scmp.eq.s32.totalorder %s12, 0
      %p79 = por %p77, %p78
      %p80 = scmp.ne.s32.totalorder %s69, %s72
      %p81 = scmp.eq.s32.totalorder %s17, 1
      %p82 = por %p80, %p81
      %p83 = scmp.ne.s32.totalorder %s72, %s73
      %p84 = scmp.eq.s32.totalorder %s17, 0
      %p85 = por %p83, %p84
      %p86 = scmp.ne.s32.totalorder %s72, %s73
      %p87 = scmp.eq.s32.totalorder %s18, 1
      %p88 = por %p86, %p87
      %p90 = scmp.ne.s32.totalorder %s73, %s89
      %p91 = scmp.eq.s32.totalorder %s18, 0
      %p92 = por %p90, %p91
      %s93 = ssub.s32 %s12, %s19
      %p94 = scmp.eq.s32.totalorder %s93, 0
      %s96 = sadd.s32 %s95, 1
      %s97 = scalar_select %p94, %s95, %s96
      %p100 = pneg %p94
      %p101 = scmp.eq.s32.totalorder %s12, 1
      %p102 = por %p100, %p101
      %p103 = scmp.ne.s32.totalorder %s95, %s98
      %p104 = scmp.eq.s32.totalorder %s12, 0
      %p105 = por %p103, %p104
      %p106 = scmp.ne.s32.totalorder %s95, %s98
      %p107 = scmp.eq.s32.totalorder %s17, 1
      %p108 = por %p106, %p107
      %p109 = scmp.ne.s32.totalorder %s98, %s99
      %p110 = scmp.eq.s32.totalorder %s17, 0
      %p111 = por %p109, %p110
      %p112 = scmp.ne.s32.totalorder %s98, %s99
      %p113 = scmp.eq.s32.totalorder %s18, 1
      %p114 = por %p112, %p113
      %p116 = scmp.ne.s32.totalorder %s99, %s115
      %p117 = scmp.eq.s32.totalorder %s18, 0
      %p118 = por %p116, %p117
      %p119 = scmp.le.s32.totalorder 1, %s12
      %p120 = scmp.lt.s32.totalorder %s12, 3
      %p121 = pnand %p119, %p120
      %p122 = pneg %p121
      // Predicated region
      $region9: #{label_classifier_forward.1} parent=5 // pred_check
        _
      $region10: #{label_classifier_forward.1} parent=5 // pred_check_branch
        %124 = sbr.rel (%p121) target = $region12
      $region11: #{label_classifier_forward.1} parent=5 // pred_region
        %s125 = ssub.s32 %s12, 1
        // Predicated region
        $region13: #{label_classifier_forward.1} parent=11 // pred_check
          %p126 = pneg %p59
        $region14: #{label_classifier_forward.1} parent=11 // pred_check_branch
          %128 = sbr.rel (%p126) target = $region16
        $region15: #{label_classifier_forward.1} parent=11 // pred_region
          _
        $region16: #{label_classifier_forward.1} parent=11 // pred_fallthru
          _
      $region12: #{label_classifier_forward.1} parent=5 // pred_fallthru
        _
      %p129 = scmp.lt.s32.totalorder %s12, 2
      // Predicated region
      $region17: #{label_classifier_forward.1} parent=5 // pred_check
        %p130 = pneg %p129
      $region18: #{label_classifier_forward.1} parent=5 // pred_check_branch
        %132 = sbr.rel (%p130) target = $region20
      $region19: #{label_classifier_forward.1} parent=5 // pred_region
        // Predicated region
        $region21: #{label_classifier_forward.1} parent=19 // pred_check
          %p133 = pneg %p32
        $region22: #{label_classifier_forward.1} parent=19 // pred_check_branch
          %135 = sbr.rel (%p133) target = $region24
        $region23: #{label_classifier_forward.1} parent=19 // pred_region
          %p136 = scmp.lt.s32.totalorder %s12, 1
          %s137 = scalar_select %p136, %s12, 1
          %s138 = smul.addr %s137, 8
          %s139 = scalar_lea.vmem %s0, %s138
        $region24: #{label_classifier_forward.1} parent=19 // pred_fallthru
          _
        // Predicated region
        $region25: #{label_classifier_forward.1} parent=19 // pred_check
          %p140 = pneg %p79
        $region26: #{label_classifier_forward.1} parent=19 // pred_check_branch
          %142 = sbr.rel (%p140) target = $region28
        $region27: #{label_classifier_forward.1} parent=19 // pred_region
          %p143 = scmp.lt.s32.totalorder %s12, 1
          %s144 = scalar_select %p143, %s12, 1
          %s145 = smul.addr %s144, 8
          %s146 = scalar_lea.vmem %s2, %s145
        $region28: #{label_classifier_forward.1} parent=19 // pred_fallthru
          _
      $region20: #{label_classifier_forward.1} parent=5 // pred_fallthru
        _
      %p147 = scmp.le.s32.totalorder 1, %s12
      %p148 = scmp.lt.s32.totalorder %s12, 3
      %p149 = pnand %p147, %p148
      %p150 = pneg %p149
      // Predicated region
      $region29: #{label_classifier_forward.1} parent=5 // pred_check
        _
      $region30: #{label_classifier_forward.1} parent=5 // pred_check_branch
        %152 = sbr.rel (%p149) target = $region32
      $region31: #{label_classifier_forward.1} parent=5 // pred_region
        %s153 = ssub.s32 %s12, 1
        %p154 = scmp.lt.s32.totalorder %s17, 1
        %s155 = scalar_select %p154, %s17, 1
        %s156 = smul.addr %s155, 8
        %s157 = scalar_lea.vmem %s0, %s156
        %p158 = pneg %p38
        %p159 = pneg %p35
        %p160 = pneg %p59
        %p161 = pneg %p56
        %p162 = scmp.lt.s32.totalorder %s17, 1
        %s163 = scalar_select %p162, %s17, 1
        %s164 = smul.addr %s163, 8
        %s165 = scalar_lea.vmem %s2, %s164
        %p166 = pneg %p85
        %p167 = pneg %p82
        %p168 = pneg %p111
        %p169 = pneg %p108
        %s170 = sand.u32 %s98, 1
        %s171 = scalar_lea.sflag [#allocation3], %s170
        %s172 = sand.u32 %s98, 1
        %s173 = smul.addr %s172, 8
        %s174 = scalar_lea.vmem [#allocation2], %s173
        %p175 = scmp.lt.s32.totalorder %s17, 1
        %s176 = scalar_select %p175, %s17, 1
        %s177 = smul.addr %s176, 8
        %s178 = scalar_lea.vmem %s0, %s177
        %p179 = scmp.lt.s32.totalorder %s17, 1
        %s180 = scalar_select %p179, %s17, 1
        %s181 = smul.addr %s180, 8
        %s182 = scalar_lea.vmem %s2, %s181
        %v183 = vld [vmem:[%s178] sm:$0xff]
        %v184 = vld [vmem:[%s1] sm:$0xff]
        %v185 = vld [vmem:[%s1 + $0x8] sm:$0xff]
        %v186 = vld [vmem:[%s1 + $0x10] sm:$0xff]
        %v187 = vld [vmem:[%s1 + $0x18] sm:$0xff]
        %vm188 = vcmask 261120
        %v190 = vsel %vm188, %v183, 0
        %192 = vmatprep.subr.mxu0 0.0
        %193 = vmatpush1.msra.mxu0 0.0
        %194 = vmatprep.subr.mxu0 0.0
        %195 = vmatpush1.msra.mxu0 0.0
        %196 = vmatprep.subr.mxu0 0.0
        %197 = vmatpush1.msra.mxu0 0.0
        %198 = vmatprep.subr.mxu0 0.0
        %199 = vmatpush1.msra.mxu0 0.0
        %200 = vmatprep.subr.mxu0 0.0
        %201 = vmatpush1.msra.mxu0 0.0
        %202 = vmatprep.subr.mxu0 0.0
        %203 = vmatpush1.msra.mxu0 0.0
        %204 = vmatprep.subr.mxu0 0.0
        %205 = vmatpush1.msra.mxu0 0.0
        %206 = vmatprep.subr.mxu0 0.0
        %207 = vmatpush1.msra.mxu0 0.0
        %208 = vmatprep.subr.mxu0 0.0
        %209 = vmatpush1.msra.mxu0 0.0
        %210 = vmatprep.subr.mxu0 0.0
        %211 = vmatpush1.msra.mxu0 0.0
        %212 = vmatprep.subr.mxu0 0.0
        %213 = vmatpush1.msra.mxu0 0.0
        %214 = vmatprep.subr.mxu0 0.0
        %215 = vmatpush1.msra.mxu0 0.0
        %216 = vmatprep.subr.mxu0 0.0
        %217 = vmatpush1.msra.mxu0 %v187
        %218 = vmatprep.subr.mxu0 0.0
        %219 = vmatpush1.msra.mxu0 %v186
        %220 = vmatprep.subr.mxu0 0.0
        %221 = vmatpush1.msra.mxu0 %v185
        %222 = vmatprep.subr.mxu0 0.0
        %223 = vmatpush1.msra.mxu0 %v184
        %224 = vmatprep.subr.mxu0 0.0
        %225 = vmatpush2.msra.mxu0 0.0
        %226 = vmatprep.subr.mxu0 0.0
        %227 = vmatpush2.msra.mxu0 0.0
        %228 = vmatprep.subr.mxu0 0.0
        %229 = vmatpush2.msra.mxu0 0.0
        %230 = vmatprep.subr.mxu0 0.0
        %231 = vmatpush2.msra.mxu0 0.0
        %232 = vmatprep.subr.mxu0 0.0
        %233 = vmatpush2.msra.mxu0 0.0
        %234 = vmatprep.subr.mxu0 0.0
        %235 = vmatpush2.msra.mxu0 0.0
        %236 = vmatprep.subr.mxu0 0.0
        %237 = vmatpush2.msra.mxu0 0.0
        %238 = vmatprep.subr.mxu0 0.0
        %239 = vmatpush2.msra.mxu0 0.0
        %240 = vmatprep.subr.mxu0 0.0
        %241 = vmatpush2.msra.mxu0 0.0
        %242 = vmatprep.subr.mxu0 0.0
        %243 = vmatpush2.msra.mxu0 0.0
        %244 = vmatprep.subr.mxu0 0.0
        %245 = vmatpush2.msra.mxu0 0.0
        %246 = vmatprep.subr.mxu0 0.0
        %247 = vmatpush2.msra.mxu0 0.0
        %248 = vmatprep.subr.mxu0 0.0
        %249 = vmatpush2.msra.mxu0 0.0
        %250 = vmatprep.subr.mxu0 0.0
        %251 = vmatpush2.msra.mxu0 0.0
        %252 = vmatprep.subr.mxu0 0.0
        %253 = vmatpush2.msra.mxu0 0.0
        %254 = vmatprep.subr.mxu0 0.0
        %255 = vmatpush2.msra.mxu0 0.0
        %256 = vmatprep.mubr.f32.mxu0 0.0
        %257 = vmatmul.mubr.f32.gmra.mxu0 %v190
        %v258 = vpop.f32.mrf.mxu0
        %v259 = vadd.f32 0.0, %v258
        %v260 = vpop.f32.mrf.mxu0
        %261 = vdwg.mxu0
        %v262 = vld [vmem:[%s182] sm:$0xff]
        %vm263 = vcmp.gt.s32.totalorder %v262, 0
        %v264 = vlaneseq
        %v265 = vand.u32 %v264, 127
        %vm266 = vcmp.lt.s32.totalorder %v265, 16
        %v267 = vsel %vm263, 1, 0
        %268 = vset.pattern.permute.xlu0 0
        %269 = vperm.xlu0 %268, %v267
        %v270 = vpop.permute.xlu0 %269
        %vm271 = vcmp.eq.s32.totalorder %v270, 1
        %v272 = vsel %vm266, 1, 0
        %vm273 = vcmp.eq.s32.totalorder %v272, 1
        %vm274 = vmand %vm271, %vm273
        %v275 = vsel %vm274, %v259, -inf
        %276 = vst [vmem:[%s174] sm:$0xff] %v275
        %s277 = sand.u32 %s98, 1
        %s278 = scalar_lea.sflag [#allocation3], %s277
        %s279 = sand.u32 %s98, 1
        %s280 = smul.addr %s279, 8
        %s281 = scalar_lea.vmem [#allocation2], %s280
        // Predicated region
        $region33: #{label_classifier_forward.1} parent=31 // pred_check
          %p282 = pneg %p108
        $region34: #{label_classifier_forward.1} parent=31 // pred_check_branch
          %284 = sbr.rel (%p282) target = $region36
        $region35: #{label_classifier_forward.1} parent=31 // pred_region
          %s286 = ssub.s32 128, 128
          %287 = vsyncadd %s278, %s286
          %s288 = smul.addr %s17, 128
          %s289 = scalar_lea.hbm %s3, %s288
          %s291 = sshll.u32 %s281, 4
          %s292 = int_to_ptr.vmem [resolvable:$true] %s291
          %294 = dma.vmem_to_hbm [thread:$0]  %s292, 128, %s289, %s278
        $region36: #{label_classifier_forward.1} parent=31 // pred_fallthru
          _
      $region32: #{label_classifier_forward.1} parent=5 // pred_fallthru
        _
      %p295 = scmp.le.s32.totalorder 2, %s12
      // Predicated region
      $region37: #{label_classifier_forward.1} parent=5 // pred_check
        %p296 = pneg %p295
      $region38: #{label_classifier_forward.1} parent=5 // pred_check_branch
        %298 = sbr.rel (%p296) target = $region40
      $region39: #{label_classifier_forward.1} parent=5 // pred_region
        %s299 = ssub.s32 %s12, 2
        // Predicated region
        $region41: #{label_classifier_forward.1} parent=39 // pred_check
          %p300 = pneg %p114
        $region42: #{label_classifier_forward.1} parent=39 // pred_check_branch
          %302 = sbr.rel (%p300) target = $region44
        $region43: #{label_classifier_forward.1} parent=39 // pred_region
          %s303 = sand.u32 %s99, 1
          %s304 = scalar_lea.sflag [#allocation3], %s303
          %s305 = sand.u32 %s99, 1
          %s306 = smul.addr %s305, 8
          %s307 = scalar_lea.vmem [#allocation2], %s306
          %308 = dma.done %s304, 128
        $region44: #{label_classifier_forward.1} parent=39 // pred_fallthru
          _
      $region40: #{label_classifier_forward.1} parent=5 // pred_fallthru
        _
    $region6: #{label_classifier_forward.1} parent=1 // loop_footer
      %s16 = sadd.s32 1, %s12
    $region7: #{label_classifier_forward.1} parent=1 // loop_footer_branch
      %11 = sbr.rel target = $region3
    $region8: #{label_classifier_forward.1} parent=1 // loop_exit
      _
    %309 = vsyncpa [#allocation3], 1
    %s310 = scalar_lea.sflag [#allocation3], 1
    %311 = vsyncpa %s310, 1

</llo_original>
